<compile_context>
chip_gen: v7x
topology: tpu7x:2x2x1
jax: 0.10.0
libtpu: 0.0.40
codegen_flags: <defaults>
</compile_context>

<pallas_src>
import functools

import jax
import jax.numpy as jnp
from jax.experimental import pallas as pl
from jax.experimental.pallas import tpu as pltpu


# ----------------------------------------------------------------------------
# Pallas kernel: whole inception block for one tile of rows (rows on lanes).
# ----------------------------------------------------------------------------
def _inception_kernel(x_ref,
                      wh_ref, bh_ref,      # fused 1x1 heads (branch 1 / 2a / 3a)
                      w2b_ref, b2b_ref,    # branch 2, (1,3) conv
                      w3b_ref, b3b_ref,    # branch 3, first (1,3) conv
                      w3c_ref, b3c_ref,    # branch 3, second (1,3) conv
                      w4_ref, b4_ref,      # branch 4, 1x1 conv after maxpool
                      o_ref,
                      *, head_splits, width):
    _, rows = x_ref.shape
    W = width
    cdt = x_ref.dtype                        # MXU input dtype (bf16 or f32)
    f32 = jnp.float32

    x_t = x_ref[...]                         # (cin, rows); rows = tile_m * W

    # W-edge masks for the roll-based shifts (lane index modulo W).
    lane = jax.lax.broadcasted_iota(jnp.int32, (1, rows), 1)
    w_idx = (lane & (W - 1)) if (W & (W - 1)) == 0 else lane % W
    is_w0 = w_idx == 0
    is_wl = w_idx == W - 1

    def mm_bias_relu(w_ref, a, b_ref):
        # (cout, K) x (K, rows) on the MXU, f32 accumulate, f32 bias + ReLU.
        y = jnp.dot(w_ref[...], a, preferred_element_type=f32)
        return jnp.maximum(y + b_ref[...], 0.0)              # (cout, rows) f32

    def shifted_cat(t):
        # t: (c, rows) -> (3c, rows) = [x[w-1]; x[w]; x[w+1]] stacked on
        # sublanes, zeros at the W edges (Conv2d kernel (1,3), padding (0,1)).
        zero = jnp.zeros((), t.dtype)
        left = jnp.where(is_w0, zero, pltpu.roll(t, shift=1, axis=1))
        right = jnp.where(is_wl, zero, pltpu.roll(t, shift=rows - 1, axis=1))
        return jnp.concatenate([left, t, right], axis=0)

    def conv1x3(t_f32, w_ref, b_ref):
        return mm_bias_relu(w_ref, shifted_cat(t_f32.astype(cdt)), b_ref)

    # --- fused 1x1 heads for branches 1, 2, 3 (single matmul) ----------------
    head = mm_bias_relu(wh_ref, x_t, bh_ref)                 # (c1+c2a+c3a, rows)
    c1, c2a, c3a = head_splits
    o1 = head[:c1]
    t2 = head[c1:c1 + c2a]
    t3 = head[c1 + c2a:c1 + c2a + c3a]

    # --- branch 2: (1,3) conv -------------------------------------------------
    o2 = conv1x3(t2, w2b_ref, b2b_ref)

    # --- branch 3: (1,3) conv -> (1,3) conv ------------------------------------
    t3b = conv1x3(t3, w3b_ref, b3b_ref)
    o3 = conv1x3(t3b, w3c_ref, b3c_ref)
    # TODO(synk): the branch-2 and branch-3 first (1,3) convs could be merged
    # into one matmul with a block-diagonal weight for a small extra win.

    # --- branch 4: MaxPool (1,3), stride 1, pad (0,1) -> 1x1 conv --------------
    # Max is exact in the compute dtype (no f32 upcast of the x tile); the W
    # edges reuse the center value (max(x, x) == x), so no -inf pad tensor.
    xl = jnp.where(is_w0, x_t, pltpu.roll(x_t, shift=1, axis=1))
    xr = jnp.where(is_wl, x_t, pltpu.roll(x_t, shift=rows - 1, axis=1))
    xp = jnp.maximum(jnp.maximum(xl, x_t), xr)
    o4 = mm_bias_relu(w4_ref, xp, b4_ref)

    # --- single lane-dense output tile (no host-side concat) -------------------
    out = jnp.concatenate([o1, o2, o3, o4], axis=0)           # (ctot, rows) f32
    o_ref[...] = out.astype(o_ref.dtype)


# ----------------------------------------------------------------------------
# Parameter construction (deterministic, BN folded in inference mode).
# ----------------------------------------------------------------------------
def make_convbnrelu_params(key, cin, cout, kw):
    kW, kb, kg, kbe, km, kv = jax.random.split(key, 6)
    w = 0.1 * jax.random.normal(kW, (kw, cin, cout), jnp.float32)
    b = 0.1 * jax.random.normal(kb, (cout,), jnp.float32)
    gamma = 1.0 + 0.1 * jax.random.normal(kg, (cout,), jnp.float32)
    beta = 0.1 * jax.random.normal(kbe, (cout,), jnp.float32)
    mean = 0.1 * jax.random.normal(km, (cout,), jnp.float32)
    var = 0.5 + 0.1 * jnp.abs(jax.random.normal(kv, (cout,), jnp.float32))
    eps = 1e-5
    s = gamma / jnp.sqrt(var + eps)
    # TODO(synk): PyTorch BatchNorm2d in *training* mode uses batch statistics;
    # only inference-mode (running-stats) BN is implemented (standard fold).
    w_eff = w * s                                  # fold BN scale into weights
    b_eff = (b - mean) * s + beta                  # fold BN shift into bias
    if kw == 1:
        w_eff = w_eff[0]                           # (cin, cout)
    return w_eff, b_eff


def make_block_params(key, in_channel, b1c, b2c, b3c, b4c):
    keys = jax.random.split(key, 7)
    p = []
    p += make_convbnrelu_params(keys[0], in_channel, b1c[0], 1)     # branch 1
    p += make_convbnrelu_params(keys[1], in_channel, b2c[0], 1)     # branch 2a
    p += make_convbnrelu_params(keys[2], b2c[0], b2c[1], 3)         # branch 2b
    p += make_convbnrelu_params(keys[3], in_channel, b3c[0], 1)     # branch 3a
    p += make_convbnrelu_params(keys[4], b3c[0], b3c[1], 3)         # branch 3b
    p += make_convbnrelu_params(keys[5], b3c[1], b3c[2], 3)         # branch 3c
    p += make_convbnrelu_params(keys[6], in_channel, b4c[0], 1)     # branch 4
    return tuple(p)


def prepare_kernel_params(params, compute_dtype):
    """Transpose weights to (cout, K), fuse the three 1x1 heads, reshape the
    (1,3) weights to (cout, 3*Cin); biases stay f32 as (cout, 1) columns."""
    (w1, b1, w2a, b2a, w2b, b2b, w3a, b3a, w3b, b3b, w3c, b3c, w4, b4) = params
    f32 = jnp.float32

    def t1(w):                      # (cin, cout) -> (cout, cin)
        return w.T.astype(compute_dtype)

    def t3(w):                      # (3, cin, cout) -> (cout, 3*cin)
        return w.reshape(-1, w.shape[-1]).T.astype(compute_dtype)

    def bc(b):                      # (cout,) -> (cout, 1) f32
        return b.reshape(-1, 1).astype(f32)

    wh = jnp.concatenate([t1(w1), t1(w2a), t1(w3a)], axis=0)
    bh = jnp.concatenate([bc(b1), bc(b2a), bc(b3a)], axis=0)
    kp = (wh, bh,
          t3(w2b), bc(b2b),
          t3(w3b), bc(b3b),
          t3(w3c), bc(b3c),
          t1(w4), bc(b4))
    head_splits = (w1.shape[-1], w2a.shape[-1], w3a.shape[-1])
    out_channels = (w1.shape[-1], w2b.shape[-1], w3c.shape[-1], w4.shape[-1])
    return kp, head_splits, out_channels


# ----------------------------------------------------------------------------
# VMEM / tile-size heuristics (padding-aware, per chip generation).
# ----------------------------------------------------------------------------
def _round_up(x, m):
    return ((x + m - 1) // m) * m


def _padded_size_bytes(shape, dtype):
    """VMEM footprint of one buffer including (sublane, lane) tile padding."""
    itemsize = jnp.dtype(dtype).itemsize
    shape = tuple(int(s) for s in shape)
    if len(shape) == 0:
        return itemsize
    if len(shape) == 1:
        return _round_up(shape[0], 128) * itemsize
    sub = max(1, (8 * 4) // itemsize)              # 8 for f32, 16 for bf16
    lead = 1
    for s in shape[:-2]:
        lead *= s
    return lead * _round_up(shape[-2], sub) * _round_up(shape[-1], 128) * itemsize


def _vmem_estimate(tile_rows, cin, ctot, head_splits, conv_channels,
                   kernel_params, compute_dtype, out_dtype):
    """Conservative per-step VMEM footprint: double-buffered I/O + weights +
    all intermediates, each rounded up to (sublane, lane) tiles."""
    f32 = jnp.float32
    c1, c2a, c3a = head_splits
    c2b, c3b, c3c, c4 = conv_channels
    est = 2 * _padded_size_bytes((cin, tile_rows), compute_dtype)        # x
    est += 2 * _padded_size_bytes((ctot, tile_rows), out_dtype)          # out
    est += 2 * sum(_padded_size_bytes(p.shape, p.dtype) for p in kernel_params)
    est += _padded_size_bytes((c1 + c2a + c3a, tile_rows), f32)          # head
    for cc, co in ((c2a, c2b), (c3a, c3b), (c3b, c3c)):
        est += _padded_size_bytes((3 * cc, tile_rows), compute_dtype)    # shift cat
        est += _padded_size_bytes((co, tile_rows), f32)                  # conv out
    est += 2 * _padded_size_bytes((cin, tile_rows), compute_dtype)       # maxpool
    est += _padded_size_bytes((c4, tile_rows), f32)                      # o4
    est += _padded_size_bytes((ctot, tile_rows), f32)                    # concat
    return est


def _tpu_vmem_bytes():
    try:
        return int(pltpu.get_tpu_info().vmem_capacity_bytes)
    except Exception:
        return 128 * 1024 * 1024


def _pick_tile_m(M, W, Mw, est_fn, budget, min_steps):
    """Largest tile_m (divisor of M, tile_m*W lane-aligned) that fits the VMEM
    budget while keeping >= min_steps grid steps (>= 2 per TensorCore)."""
    cands = [d for d in range(1, M + 1)
             if M % d == 0 and ((d * W) % 128 == 0 or d * W == Mw)]
    fits = [d for d in cands if est_fn(d * W) <= budget]
    if not fits:
        return min(cands)
    pref = [d for d in fits if M // d >= min_steps]
    if pref:
        return max(pref)
    pref2 = [d for d in fits if M // d >= 2]
    return max(pref2) if pref2 else max(fits)


# ----------------------------------------------------------------------------
# Wrapper: layout plumbing + pallas_call.
# ----------------------------------------------------------------------------
def dct_inception_block(x, params, *, compute_dtype=jnp.bfloat16,
                        out_dtype=jnp.float32, tile_m=None, interpret=False):
    # x: (N, C, H, W) in the PyTorch NCHW convention; H == in_channel.
    N, C, H, W = x.shape
    cin = H
    M = N * C
    Mw = M * W

    kp, head_splits, out_channels = prepare_kernel_params(params, compute_dtype)
    ctot = sum(out_channels)
    conv_channels = (kp[2].shape[0], kp[4].shape[0], kp[6].shape[0], kp[8].shape[0])

    # Channels-on-sublanes / rows-on-lanes layout: (Cin, N*C*W).  One host-side
    # XLA transpose makes every kernel intermediate and store lane-dense.
    # TODO(synk): if the producer of x can emit the (H, N, C, W) layout directly
    # this transpose (a full HBM pass) disappears.
    xk = jnp.transpose(x, (2, 0, 1, 3)).reshape(cin, Mw).astype(compute_dtype)

    def est_fn(tile_rows):
        return _vmem_estimate(tile_rows, cin, ctot, head_splits, conv_channels,
                              kp, compute_dtype, out_dtype)

    # Per-generation budgets: v7x has 64 MiB VMEM / TC and 2 TCs (megacore needs
    # >= 2 blocks per core to pipeline); v5e/v6e have 128 MiB and a single TC.
    vmem_cap = _tpu_vmem_bytes()
    if vmem_cap <= 80 * 1024 * 1024:
        budget, limit_cap, min_steps = 24 << 20, 40 << 20, 4
    else:
        budget, limit_cap, min_steps = 56 << 20, 96 << 20, 2

    if tile_m is None:
        tile_m = _pick_tile_m(M, W, Mw, est_fn, budget, min_steps)
    assert M % tile_m == 0, (M, tile_m)
    tile_rows = tile_m * W
    assert tile_rows % 128 == 0 or tile_rows == Mw, (tile_rows, Mw)
    num_steps = M // tile_m

    vmem_limit = int(min(limit_cap, max(32 << 20, 2 * est_fn(tile_rows))))

    def const_spec(p):
        nd = p.ndim
        return pl.BlockSpec(p.shape, lambda i, nd=nd: (0,) * nd)

    if num_steps >= 4:
        # Deeper buffering on the streaming input: per-step compute is tiny, so
        # a third buffer helps hide input DMA latency (mainly v5e / v6e).
        x_spec = pl.BlockSpec((cin, tile_rows), lambda i: (0, i),
                              pipeline_mode=pl.Buffered(3))
    else:
        x_spec = pl.BlockSpec((cin, tile_rows), lambda i: (0, i))

    in_specs = [x_spec] + [const_spec(p) for p in kp]
    out_specs = pl.BlockSpec((ctot, tile_rows), lambda i: (0, i))
    out_shape = jax.ShapeDtypeStruct((ctot, Mw), out_dtype)

    kernel = functools.partial(_inception_kernel,
                               head_splits=head_splits, width=W)

    out = pl.pallas_call(
        kernel,
        grid=(num_steps,),
        in_specs=in_specs,
        out_specs=out_specs,
        out_shape=out_shape,
        compiler_params=pltpu.CompilerParams(
            dimension_semantics=("parallel",),
            vmem_limit_bytes=vmem_limit),
        interpret=interpret,
    )(xk, *kp)

    # (Ctot, N*C*W) -> (N, C, Ctot, W) to match the PyTorch module's output.
    # TODO(synk): if downstream can consume the (Ctot, N*C*W) layout, drop this
    # transpose — it is an extra full HBM pass over the output.
    return out.reshape(ctot, N, C, W).transpose(1, 2, 0, 3)


# ----------------------------------------------------------------------------
# Pure-JAX reference (same math, no Pallas) for correctness checks.
# ----------------------------------------------------------------------------
def _ref_conv1x1(inp, w, b):
    y = jnp.einsum('mwc,cd->mwd', inp, w,
                   precision=jax.lax.Precision.HIGHEST) + b
    return jnp.maximum(y, 0.0)


def _ref_shifts(inp, pad_val):
    pad = jnp.full((inp.shape[0], 1, inp.shape[2]), pad_val, inp.dtype)
    return (jnp.concatenate([pad, inp[:, :-1, :]], axis=1),
            jnp.concatenate([inp[:, 1:, :], pad], axis=1))


def _ref_conv1x3(inp, w, b):
    l, r = _ref_shifts(inp, 0.0)
    hp = jax.lax.Precision.HIGHEST
    y = (jnp.einsum('mwc,cd->mwd', l, w[0], precision=hp)
         + jnp.einsum('mwc,cd->mwd', inp, w[1], precision=hp)
         + jnp.einsum('mwc,cd->mwd', r, w[2], precision=hp) + b)
    return jnp.maximum(y, 0.0)


def ref_forward(x, params):
    (w1, b1, w2a, b2a, w2b, b2b, w3a, b3a, w3b, b3b, w3c, b3c, w4, b4) = params
    N, C, H, W = x.shape
    xk = jnp.transpose(x, (0, 1, 3, 2)).reshape(N * C, W, H)
    o1 = _ref_conv1x1(xk, w1, b1)
    o2 = _ref_conv1x3(_ref_conv1x1(xk, w2a, b2a), w2b, b2b)
    t = _ref_conv1x1(xk, w3a, b3a)
    t = _ref_conv1x3(t, w3b, b3b)
    o3 = _ref_conv1x3(t, w3c, b3c)
    l, r = _ref_shifts(xk, -jnp.inf)
    o4 = _ref_conv1x1(jnp.maximum(jnp.maximum(l, xk), r), w4, b4)
    out = jnp.concatenate([o1, o2, o3, o4], axis=-1)
    ctot = out.shape[-1]
    return out.reshape(N, C, W, ctot).transpose(0, 1, 3, 2)


# ----------------------------------------------------------------------------
if __name__ == "__main__":
    # Small config consistent with the module structure.
    in_channel = 16
    branch1_channels = [8]
    branch2_channels = [6, 8]
    branch3_channels = [8, 12, 12]
    branch4_channels = [4]
    ctot = (branch1_channels[0] + branch2_channels[1]
            + branch3_channels[2] + branch4_channels[0])

    N, C, H, W = 2, 8, in_channel, 16   # PyTorch NCHW input; H == in_channel

    key = jax.random.PRNGKey(0)
    kx, kparam = jax.random.split(key)
    x = jax.random.normal(kx, (N, C, H, W), jnp.float32)
    params = make_block_params(kparam, in_channel, branch1_channels,
                               branch2_channels, branch3_channels,
                               branch4_channels)

    ref = jax.block_until_ready(ref_forward(x, params))

    # Exact-path check (f32 MXU inputs everywhere).
    out_f32 = jax.block_until_ready(
        dct_inception_block(x, params, compute_dtype=jnp.float32))
    assert out_f32.shape == (N, C, ctot, W), out_f32.shape
    assert jnp.allclose(out_f32, ref, rtol=1e-3, atol=1e-3)

    # Performance default: bf16 MXU inputs, f32 accumulation + f32 epilogues
    # (sanity check only; the f32 path above is the exact check).
    out_bf16 = jax.block_until_ready(
        dct_inception_block(x, params, compute_dtype=jnp.bfloat16))
    assert out_bf16.shape == (N, C, ctot, W), out_bf16.shape
    assert jnp.allclose(out_bf16, ref, rtol=5e-2, atol=5e-2)

    print("KERNEL_OK")
</pallas_src>

<mosaic_0001>
module attributes {stable_mosaic.version = 11 : i64} {
  func.func @_inception_kernel(%arg0: i32, %arg1: memref<16x128xf32, #tpu.memory_space<vmem>>, %arg2: memref<22x16xf32, #tpu.memory_space<vmem>>, %arg3: memref<22x1xf32, #tpu.memory_space<vmem>>, %arg4: memref<8x18xf32, #tpu.memory_space<vmem>>, %arg5: memref<8x1xf32, #tpu.memory_space<vmem>>, %arg6: memref<12x24xf32, #tpu.memory_space<vmem>>, %arg7: memref<12x1xf32, #tpu.memory_space<vmem>>, %arg8: memref<12x36xf32, #tpu.memory_space<vmem>>, %arg9: memref<12x1xf32, #tpu.memory_space<vmem>>, %arg10: memref<4x16xf32, #tpu.memory_space<vmem>>, %arg11: memref<4x1xf32, #tpu.memory_space<vmem>>, %arg12: memref<32x128xf32, #tpu.memory_space<vmem>>) attributes {dimension_semantics = [#tpu.dimension_semantics<parallel>], iteration_bounds = array<i64: 2>, scalar_prefetch = 0 : i64, scratch_operands = 0 : i64, tpu.core_type = #tpu.core_type<tc>, window_params = [{transform_indices = @transform_0, window_bounds = array<i64: 16, 128>}, {pipeline_mode = #tpu.pipeline_mode<synchronous>, transform_indices = @transform_1, window_bounds = array<i64: 22, 16>}, {pipeline_mode = #tpu.pipeline_mode<synchronous>, transform_indices = @transform_2, window_bounds = array<i64: 22, 1>}, {pipeline_mode = #tpu.pipeline_mode<synchronous>, transform_indices = @transform_3, window_bounds = array<i64: 8, 18>}, {pipeline_mode = #tpu.pipeline_mode<synchronous>, transform_indices = @transform_4, window_bounds = array<i64: 8, 1>}, {pipeline_mode = #tpu.pipeline_mode<synchronous>, transform_indices = @transform_5, window_bounds = array<i64: 12, 24>}, {pipeline_mode = #tpu.pipeline_mode<synchronous>, transform_indices = @transform_6, window_bounds = array<i64: 12, 1>}, {pipeline_mode = #tpu.pipeline_mode<synchronous>, transform_indices = @transform_7, window_bounds = array<i64: 12, 36>}, {pipeline_mode = #tpu.pipeline_mode<synchronous>, transform_indices = @transform_8, window_bounds = array<i64: 12, 1>}, {pipeline_mode = #tpu.pipeline_mode<synchronous>, transform_indices = @transform_9, window_bounds = array<i64: 4, 16>}, {pipeline_mode = #tpu.pipeline_mode<synchronous>, transform_indices = @transform_10, window_bounds = array<i64: 4, 1>}, {transform_indices = @transform_11, window_bounds = array<i64: 32, 128>}]} {
    %c0 = arith.constant 0 : index
    %c0_0 = arith.constant 0 : index
    %0 = vector.load %arg1[%c0, %c0_0] : memref<16x128xf32, #tpu.memory_space<vmem>>, vector<16x128xf32>
    %1 = tpu.iota {dimensions = array<i32: 1>} : vector<1x128xi32>
    %c15_i32 = arith.constant 15 : i32
    %2 = vector.broadcast %c15_i32 : i32 to vector<1x128xi32>
    %3 = arith.andi %1, %2 : vector<1x128xi32>
    %c0_i32 = arith.constant 0 : i32
    %4 = vector.broadcast %c0_i32 : i32 to vector<1x128xi32>
    %5 = arith.cmpi eq, %3, %4 : vector<1x128xi32>
    %c15_i32_1 = arith.constant 15 : i32
    %6 = vector.broadcast %c15_i32_1 : i32 to vector<1x128xi32>
    %7 = arith.cmpi eq, %3, %6 : vector<1x128xi32>
    %c0_2 = arith.constant 0 : index
    %c0_3 = arith.constant 0 : index
    %8 = vector.load %arg2[%c0_2, %c0_3] : memref<22x16xf32, #tpu.memory_space<vmem>>, vector<22x16xf32>
    %cst = arith.constant dense<0.000000e+00> : vector<22x128xf32>
    %9 = tpu.matmul %8, %0, %cst {dimension_numbers = #tpu.dot_dimension_numbers<[1], [0], [0], [1], [0, 0, 1, 1], [], []>} : vector<22x16xf32>, vector<16x128xf32>, vector<22x128xf32> -> vector<22x128xf32>
    %c0_4 = arith.constant 0 : index
    %c0_5 = arith.constant 0 : index
    %10 = vector.load %arg3[%c0_4, %c0_5] : memref<22x1xf32, #tpu.memory_space<vmem>>, vector<22x1xf32>
    %11 = vector.broadcast %10 : vector<22x1xf32> to vector<22x128xf32>
    %12 = arith.addf %9, %11 : vector<22x128xf32>
    %cst_6 = arith.constant 0.000000e+00 : f32
    %13 = vector.broadcast %cst_6 : f32 to vector<22x128xf32>
    %14 = arith.maximumf %12, %13 : vector<22x128xf32>
    %15 = vector.extract_strided_slice %14 {offsets = [0, 0], sizes = [8, 128], strides = [1, 1]} : vector<22x128xf32> to vector<8x128xf32>
    %16 = vector.extract_strided_slice %14 {offsets = [8, 0], sizes = [6, 128], strides = [1, 1]} : vector<22x128xf32> to vector<6x128xf32>
    %17 = vector.extract_strided_slice %14 {offsets = [14, 0], sizes = [8, 128], strides = [1, 1]} : vector<22x128xf32> to vector<8x128xf32>
    %c1_i32 = arith.constant 1 : i32
    %18 = tpu.dynamic_rotate %16 by %c1_i32 dim 1 : vector<6x128xf32>, i32 -> vector<6x128xf32>
    %cst_7 = arith.constant 0.000000e+00 : f32
    %19 = vector.shape_cast %5 : vector<1x128xi1> to vector<1x128xi1>
    %20 = vector.broadcast %19 : vector<1x128xi1> to vector<6x128xi1>
    %21 = vector.broadcast %cst_7 : f32 to vector<6x128xf32>
    %22 = arith.select %20, %21, %18 : vector<6x128xi1>, vector<6x128xf32>
    %c127_i32 = arith.constant 127 : i32
    %23 = tpu.dynamic_rotate %16 by %c127_i32 dim 1 : vector<6x128xf32>, i32 -> vector<6x128xf32>
    %cst_8 = arith.constant 0.000000e+00 : f32
    %24 = vector.shape_cast %7 : vector<1x128xi1> to vector<1x128xi1>
    %25 = vector.broadcast %24 : vector<1x128xi1> to vector<6x128xi1>
    %26 = vector.broadcast %cst_8 : f32 to vector<6x128xf32>
    %27 = arith.select %25, %26, %23 : vector<6x128xi1>, vector<6x128xf32>
    %28 = tpu.concatenate %22, %16, %27 in 0 : vector<6x128xf32>, vector<6x128xf32>, vector<6x128xf32> -> vector<18x128xf32>
    %c0_9 = arith.constant 0 : index
    %c0_10 = arith.constant 0 : index
    %29 = vector.load %arg4[%c0_9, %c0_10] : memref<8x18xf32, #tpu.memory_space<vmem>>, vector<8x18xf32>
    %cst_11 = arith.constant dense<0.000000e+00> : vector<8x128xf32>
    %30 = tpu.matmul %29, %28, %cst_11 {dimension_numbers = #tpu.dot_dimension_numbers<[1], [0], [0], [1], [0, 0, 1, 1], [], []>} : vector<8x18xf32>, vector<18x128xf32>, vector<8x128xf32> -> vector<8x128xf32>
    %c0_12 = arith.constant 0 : index
    %c0_13 = arith.constant 0 : index
    %31 = vector.load %arg5[%c0_12, %c0_13] : memref<8x1xf32, #tpu.memory_space<vmem>>, vector<8x1xf32>
    %32 = vector.broadcast %31 : vector<8x1xf32> to vector<8x128xf32>
    %33 = arith.addf %30, %32 : vector<8x128xf32>
    %cst_14 = arith.constant 0.000000e+00 : f32
    %34 = vector.broadcast %cst_14 : f32 to vector<8x128xf32>
    %35 = arith.maximumf %33, %34 : vector<8x128xf32>
    %c1_i32_15 = arith.constant 1 : i32
    %36 = tpu.dynamic_rotate %17 by %c1_i32_15 dim 1 : vector<8x128xf32>, i32 -> vector<8x128xf32>
    %cst_16 = arith.constant 0.000000e+00 : f32
    %37 = vector.shape_cast %5 : vector<1x128xi1> to vector<1x128xi1>
    %38 = vector.broadcast %37 : vector<1x128xi1> to vector<8x128xi1>
    %39 = vector.broadcast %cst_16 : f32 to vector<8x128xf32>
    %40 = arith.select %38, %39, %36 : vector<8x128xi1>, vector<8x128xf32>
    %c127_i32_17 = arith.constant 127 : i32
    %41 = tpu.dynamic_rotate %17 by %c127_i32_17 dim 1 : vector<8x128xf32>, i32 -> vector<8x128xf32>
    %cst_18 = arith.constant 0.000000e+00 : f32
    %42 = vector.shape_cast %7 : vector<1x128xi1> to vector<1x128xi1>
    %43 = vector.broadcast %42 : vector<1x128xi1> to vector<8x128xi1>
    %44 = vector.broadcast %cst_18 : f32 to vector<8x128xf32>
    %45 = arith.select %43, %44, %41 : vector<8x128xi1>, vector<8x128xf32>
    %46 = tpu.concatenate %40, %17, %45 in 0 : vector<8x128xf32>, vector<8x128xf32>, vector<8x128xf32> -> vector<24x128xf32>
    %c0_19 = arith.constant 0 : index
    %c0_20 = arith.constant 0 : index
    %47 = vector.load %arg6[%c0_19, %c0_20] : memref<12x24xf32, #tpu.memory_space<vmem>>, vector<12x24xf32>
    %cst_21 = arith.constant dense<0.000000e+00> : vector<12x128xf32>
    %48 = tpu.matmul %47, %46, %cst_21 {dimension_numbers = #tpu.dot_dimension_numbers<[1], [0], [0], [1], [0, 0, 1, 1], [], []>} : vector<12x24xf32>, vector<24x128xf32>, vector<12x128xf32> -> vector<12x128xf32>
    %c0_22 = arith.constant 0 : index
    %c0_23 = arith.constant 0 : index
    %49 = vector.load %arg7[%c0_22, %c0_23] : memref<12x1xf32, #tpu.memory_space<vmem>>, vector<12x1xf32>
    %50 = vector.broadcast %49 : vector<12x1xf32> to vector<12x128xf32>
    %51 = arith.addf %48, %50 : vector<12x128xf32>
    %cst_24 = arith.constant 0.000000e+00 : f32
    %52 = vector.broadcast %cst_24 : f32 to vector<12x128xf32>
    %53 = arith.maximumf %51, %52 : vector<12x128xf32>
    %c1_i32_25 = arith.constant 1 : i32
    %54 = tpu.dynamic_rotate %53 by %c1_i32_25 dim 1 : vector<12x128xf32>, i32 -> vector<12x128xf32>
    %cst_26 = arith.constant 0.000000e+00 : f32
    %55 = vector.shape_cast %5 : vector<1x128xi1> to vector<1x128xi1>
    %56 = vector.broadcast %55 : vector<1x128xi1> to vector<12x128xi1>
    %57 = vector.broadcast %cst_26 : f32 to vector<12x128xf32>
    %58 = arith.select %56, %57, %54 : vector<12x128xi1>, vector<12x128xf32>
    %c127_i32_27 = arith.constant 127 : i32
    %59 = tpu.dynamic_rotate %53 by %c127_i32_27 dim 1 : vector<12x128xf32>, i32 -> vector<12x128xf32>
    %cst_28 = arith.constant 0.000000e+00 : f32
    %60 = vector.shape_cast %7 : vector<1x128xi1> to vector<1x128xi1>
    %61 = vector.broadcast %60 : vector<1x128xi1> to vector<12x128xi1>
    %62 = vector.broadcast %cst_28 : f32 to vector<12x128xf32>
    %63 = arith.select %61, %62, %59 : vector<12x128xi1>, vector<12x128xf32>
    %64 = tpu.concatenate %58, %53, %63 in 0 : vector<12x128xf32>, vector<12x128xf32>, vector<12x128xf32> -> vector<36x128xf32>
    %c0_29 = arith.constant 0 : index
    %c0_30 = arith.constant 0 : index
    %65 = vector.load %arg8[%c0_29, %c0_30] : memref<12x36xf32, #tpu.memory_space<vmem>>, vector<12x36xf32>
    %cst_31 = arith.constant dense<0.000000e+00> : vector<12x128xf32>
    %66 = tpu.matmul %65, %64, %cst_31 {dimension_numbers = #tpu.dot_dimension_numbers<[1], [0], [0], [1], [0, 0, 1, 1], [], []>} : vector<12x36xf32>, vector<36x128xf32>, vector<12x128xf32> -> vector<12x128xf32>
    %c0_32 = arith.constant 0 : index
    %c0_33 = arith.constant 0 : index
    %67 = vector.load %arg9[%c0_32, %c0_33] : memref<12x1xf32, #tpu.memory_space<vmem>>, vector<12x1xf32>
    %68 = vector.broadcast %67 : vector<12x1xf32> to vector<12x128xf32>
    %69 = arith.addf %66, %68 : vector<12x128xf32>
    %cst_34 = arith.constant 0.000000e+00 : f32
    %70 = vector.broadcast %cst_34 : f32 to vector<12x128xf32>
    %71 = arith.maximumf %69, %70 : vector<12x128xf32>
    %c1_i32_35 = arith.constant 1 : i32
    %72 = tpu.dynamic_rotate %0 by %c1_i32_35 dim 1 : vector<16x128xf32>, i32 -> vector<16x128xf32>
    %73 = vector.shape_cast %5 : vector<1x128xi1> to vector<1x128xi1>
    %74 = vector.broadcast %73 : vector<1x128xi1> to vector<16x128xi1>
    %75 = arith.select %74, %0, %72 : vector<16x128xi1>, vector<16x128xf32>
    %c127_i32_36 = arith.constant 127 : i32
    %76 = tpu.dynamic_rotate %0 by %c127_i32_36 dim 1 : vector<16x128xf32>, i32 -> vector<16x128xf32>
    %77 = vector.shape_cast %7 : vector<1x128xi1> to vector<1x128xi1>
    %78 = vector.broadcast %77 : vector<1x128xi1> to vector<16x128xi1>
    %79 = arith.select %78, %0, %76 : vector<16x128xi1>, vector<16x128xf32>
    %80 = arith.maximumf %75, %0 : vector<16x128xf32>
    %81 = arith.maximumf %80, %79 : vector<16x128xf32>
    %c0_37 = arith.constant 0 : index
    %c0_38 = arith.constant 0 : index
    %82 = vector.load %arg10[%c0_37, %c0_38] : memref<4x16xf32, #tpu.memory_space<vmem>>, vector<4x16xf32>
    %cst_39 = arith.constant dense<0.000000e+00> : vector<4x128xf32>
    %83 = tpu.matmul %82, %81, %cst_39 {dimension_numbers = #tpu.dot_dimension_numbers<[1], [0], [0], [1], [0, 0, 1, 1], [], []>} : vector<4x16xf32>, vector<16x128xf32>, vector<4x128xf32> -> vector<4x128xf32>
    %c0_40 = arith.constant 0 : index
    %c0_41 = arith.constant 0 : index
    %84 = vector.load %arg11[%c0_40, %c0_41] : memref<4x1xf32, #tpu.memory_space<vmem>>, vector<4x1xf32>
    %85 = vector.broadcast %84 : vector<4x1xf32> to vector<4x128xf32>
    %86 = arith.addf %83, %85 : vector<4x128xf32>
    %cst_42 = arith.constant 0.000000e+00 : f32
    %87 = vector.broadcast %cst_42 : f32 to vector<4x128xf32>
    %88 = arith.maximumf %86, %87 : vector<4x128xf32>
    %89 = tpu.concatenate %15, %35, %71, %88 in 0 : vector<8x128xf32>, vector<8x128xf32>, vector<12x128xf32>, vector<4x128xf32> -> vector<32x128xf32>
    %c0_43 = arith.constant 0 : index
    %c0_44 = arith.constant 0 : index
    %90 = vector.load %arg12[%c0_43, %c0_44] : memref<32x128xf32, #tpu.memory_space<vmem>>, vector<32x128xf32>
    tpu.vector_store %arg12[%c0_43, %c0_44], %89 {strides = array<i32>} : memref<32x128xf32, #tpu.memory_space<vmem>>, vector<32x128xf32>,
    return
  }
  func.func @transform_0(%arg0: i32) -> (i32, i32) {
    %c0_i32 = arith.constant 0 : i32
    %c0_i32_0 = arith.constant 0 : i32
    return %c0_i32, %arg0 : i32, i32
  }
  func.func @transform_1(%arg0: i32) -> (i32, i32) {
    %c0_i32 = arith.constant 0 : i32
    %c0_i32_0 = arith.constant 0 : i32
    %c0_i32_1 = arith.constant 0 : i32
    return %c0_i32, %c0_i32_0 : i32, i32
  }
  func.func @transform_2(%arg0: i32) -> (i32, i32) {
    %c0_i32 = arith.constant 0 : i32
    %c0_i32_0 = arith.constant 0 : i32
    %c0_i32_1 = arith.constant 0 : i32
    return %c0_i32, %c0_i32_0 : i32, i32
  }
  func.func @transform_3(%arg0: i32) -> (i32, i32) {
    %c0_i32 = arith.constant 0 : i32
    %c0_i32_0 = arith.constant 0 : i32
    %c0_i32_1 = arith.constant 0 : i32
    return %c0_i32, %c0_i32_0 : i32, i32
  }
  func.func @transform_4(%arg0: i32) -> (i32, i32) {
    %c0_i32 = arith.constant 0 : i32
    %c0_i32_0 = arith.constant 0 : i32
    %c0_i32_1 = arith.constant 0 : i32
    return %c0_i32, %c0_i32_0 : i32, i32
  }
  func.func @transform_5(%arg0: i32) -> (i32, i32) {
    %c0_i32 = arith.constant 0 : i32
    %c0_i32_0 = arith.constant 0 : i32
    %c0_i32_1 = arith.constant 0 : i32
    return %c0_i32, %c0_i32_0 : i32, i32
  }
  func.func @transform_6(%arg0: i32) -> (i32, i32) {
    %c0_i32 = arith.constant 0 : i32
    %c0_i32_0 = arith.constant 0 : i32
    %c0_i32_1 = arith.constant 0 : i32
    return %c0_i32, %c0_i32_0 : i32, i32
  }
  func.func @transform_7(%arg0: i32) -> (i32, i32) {
    %c0_i32 = arith.constant 0 : i32
    %c0_i32_0 = arith.constant 0 : i32
    %c0_i32_1 = arith.constant 0 : i32
    return %c0_i32, %c0_i32_0 : i32, i32
  }
  func.func @transform_8(%arg0: i32) -> (i32, i32) {
    %c0_i32 = arith.constant 0 : i32
    %c0_i32_0 = arith.constant 0 : i32
    %c0_i32_1 = arith.constant 0 : i32
    return %c0_i32, %c0_i32_0 : i32, i32
  }
  func.func @transform_9(%arg0: i32) -> (i32, i32) {
    %c0_i32 = arith.constant 0 : i32
    %c0_i32_0 = arith.constant 0 : i32
    %c0_i32_1 = arith.constant 0 : i32
    return %c0_i32, %c0_i32_0 : i32, i32
  }
  func.func @transform_10(%arg0: i32) -> (i32, i32) {
    %c0_i32 = arith.constant 0 : i32
    %c0_i32_0 = arith.constant 0 : i32
    %c0_i32_1 = arith.constant 0 : i32
    return %c0_i32, %c0_i32_0 : i32, i32
  }
  func.func @transform_11(%arg0: i32) -> (i32, i32) {
    %c0_i32 = arith.constant 0 : i32
    %c0_i32_0 = arith.constant 0 : i32
    return %c0_i32, %arg0 : i32, i32
  }
}

</mosaic_0001>

<llo_original>
// kernel: tpu_custom_call.1
$region0: #{tpu_custom_call.1}
  #allocation0 [shape = 'u32[]', space=smem, size = 0x4, offset = 0x4, fixed_abs, tag = 'smem constant byte address 0x4 - core index']
  #allocation1 [shape = 'u32[144,128]{1,0:T(1,128)}', space=vmem, size = 0x12000, scoped, tag = 'internal scratch']
  %s0 = inlined_call_operand.vmem [shape: f32[16,256], index: 0, kind: input, shape index: {}]
  %s1 = inlined_call_operand.vmem [shape: f32[22,16], index: 1, kind: input, shape index: {}]
  %s2 = inlined_call_operand.vmem [shape: f32[22,1], index: 2, kind: input, shape index: {}]
  %s3 = inlined_call_operand.vmem [shape: f32[8,18], index: 3, kind: input, shape index: {}]
  %s4 = inlined_call_operand.vmem [shape: f32[8,1], index: 4, kind: input, shape index: {}]
  %s5 = inlined_call_operand.vmem [shape: f32[12,24], index: 5, kind: input, shape index: {}]
  %s6 = inlined_call_operand.vmem [shape: f32[12,1], index: 6, kind: input, shape index: {}]
  %s7 = inlined_call_operand.vmem [shape: f32[12,36], index: 7, kind: input, shape index: {}]
  %s8 = inlined_call_operand.vmem [shape: f32[12,1], index: 8, kind: input, shape index: {}]
  %s9 = inlined_call_operand.vmem [shape: f32[4,16], index: 9, kind: input, shape index: {}]
  %s10 = inlined_call_operand.vmem [shape: f32[4,1], index: 10, kind: input, shape index: {}]
  %s11 = inlined_call_operand.hbm [shape: f32[32,256], index: 11, kind: output, shape index: {}]
  %s12 = sld [smem:[#allocation0]]
  $region115: #{tpu_custom_call.1} parent=0
    _
  %s14 = ssub.s32 1, %s12
  %s15 = scalar_select 0, %s14, %s12
  $region1: #{tpu_custom_call.1} parent=0
    #allocation2 [shape = 'u8[16384]{0}', space=vmem, size = 0x4000, scoped, tag = 'input window, operand 0']
    #allocation3 [shape = 'u8[32768]{0}', space=vmem, size = 0x8000, scoped, tag = 'output window, operand 0']
    #allocation4 [shape = 's32[2]{0}', space=sflag, size = 0x8, scoped, tag = 'scoped memory for tpu_custom_call.1']
    %16 = vsyncpa [#allocation4], 0
    %s17 = scalar_lea.sflag [#allocation4], 1
    %18 = vsyncpa %s17, 0
    loop: start=0, step=1, limit=4
    $region2: #{tpu_custom_call.1} parent=1 // loop_pre_header
      _
    $region3: #{tpu_custom_call.1} parent=1 // loop_header
      %s20 = sphi 0, %s24
      %p21 = scmp.ge.s32.totalorder %s20, 4
      %s30 = sphi 0, %s32
      %s33 = sphi 0, %s30
      %s34 = sphi 0, %s33
      %s50 = sphi 0, %s34
      %s54 = sphi 0, %s54
      %s56 = sphi 0, %s54
      %s57 = sphi 0, %s56
      %s71 = sphi 0, %s57
      %s75 = sphi 0, %s75
      %s77 = sphi 0, %s75
      %s78 = sphi 0, %s77
      %s92 = sphi 0, %s78
      %s96 = sphi 0, %s96
      %s98 = sphi 0, %s96
      %s99 = sphi 0, %s98
      %s113 = sphi 0, %s99
      %s117 = sphi 0, %s117
      %s119 = sphi 0, %s117
      %s120 = sphi 0, %s119
      %s134 = sphi 0, %s120
      %s138 = sphi 0, %s138
      %s140 = sphi 0, %s138
      %s141 = sphi 0, %s140
      %s155 = sphi 0, %s141
      %s159 = sphi 0, %s159
      %s161 = sphi 0, %s159
      %s162 = sphi 0, %s161
      %s176 = sphi 0, %s162
      %s180 = sphi 0, %s180
      %s182 = sphi 0, %s180
      %s183 = sphi 0, %s182
      %s197 = sphi 0, %s183
      %s201 = sphi 0, %s201
      %s203 = sphi 0, %s201
      %s204 = sphi 0, %s203
      %s218 = sphi 0, %s204
      %s222 = sphi 0, %s222
      %s224 = sphi 0, %s222
      %s225 = sphi 0, %s224
      %s239 = sphi 0, %s225
      %s243 = sphi 0, %s243
      %s245 = sphi 0, %s243
      %s246 = sphi 0, %s245
      %s260 = sphi 0, %s246
      %s266 = sphi 0, %s268
      %s269 = sphi 0, %s266
      %s270 = sphi 0, %s269
      %s286 = sphi 0, %s270
    $region4: #{tpu_custom_call.1} parent=1 // loop_header_branch
      %23 = sbr.rel (%p21) target = $region8
    $region5: #{tpu_custom_call.1} parent=1 // loop_body
      %s25 = ssub.s32 %s20, 1
      %s26 = ssub.s32 %s20, 2
      %s27 = sadd.s32 %s20, 1
      %s28 = ssub.s32 %s20, %s27
      %p29 = scmp.eq.s32.totalorder %s28, 0
      %s31 = sadd.s32 %s30, 1
      %s32 = scalar_select %p29, %s30, %s31
      %p35 = pneg %p29
      %p36 = scmp.eq.s32.totalorder %s20, 1
      %p37 = por %p35, %p36
      %p38 = scmp.ne.s32.totalorder %s30, %s33
      %p39 = scmp.eq.s32.totalorder %s20, 0
      %p40 = por %p38, %p39
      %p41 = scmp.ne.s32.totalorder %s30, %s33
      %p42 = scmp.eq.s32.totalorder %s25, 1
      %p43 = por %p41, %p42
      %p44 = scmp.ne.s32.totalorder %s33, %s34
      %p45 = scmp.eq.s32.totalorder %s25, 0
      %p46 = por %p44, %p45
      %p47 = scmp.ne.s32.totalorder %s33, %s34
      %p48 = scmp.eq.s32.totalorder %s26, 1
      %p49 = por %p47, %p48
      %p51 = scmp.ne.s32.totalorder %s34, %s50
      %p52 = scmp.eq.s32.totalorder %s26, 0
      %p53 = por %p51, %p52
      %s55 = sadd.s32 %s54, 1
      %p58 = scmp.eq.s32.totalorder %s20, 1
      %p59 = scmp.ne.s32.totalorder %s54, %s56
      %p60 = scmp.eq.s32.totalorder %s20, 0
      %p61 = por %p59, %p60
      %p62 = scmp.ne.s32.totalorder %s54, %s56
      %p63 = scmp.eq.s32.totalorder %s25, 1
      %p64 = por %p62, %p63
      %p65 = scmp.ne.s32.totalorder %s56, %s57
      %p66 = scmp.eq.s32.totalorder %s25, 0
      %p67 = por %p65, %p66
      %p68 = scmp.ne.s32.totalorder %s56, %s57
      %p69 = scmp.eq.s32.totalorder %s26, 1
      %p70 = por %p68, %p69
      %p72 = scmp.ne.s32.totalorder %s57, %s71
      %p73 = scmp.eq.s32.totalorder %s26, 0
      %p74 = por %p72, %p73
      %s76 = sadd.s32 %s75, 1
      %p79 = scmp.eq.s32.totalorder %s20, 1
      %p80 = scmp.ne.s32.totalorder %s75, %s77
      %p81 = scmp.eq.s32.totalorder %s20, 0
      %p82 = por %p80, %p81
      %p83 = scmp.ne.s32.totalorder %s75, %s77
      %p84 = scmp.eq.s32.totalorder %s25, 1
      %p85 = por %p83, %p84
      %p86 = scmp.ne.s32.totalorder %s77, %s78
      %p87 = scmp.eq.s32.totalorder %s25, 0
      %p88 = por %p86, %p87
      %p89 = scmp.ne.s32.totalorder %s77, %s78
      %p90 = scmp.eq.s32.totalorder %s26, 1
      %p91 = por %p89, %p90
      %p93 = scmp.ne.s32.totalorder %s78, %s92
      %p94 = scmp.eq.s32.totalorder %s26, 0
      %p95 = por %p93, %p94
      %s97 = sadd.s32 %s96, 1
      %p100 = scmp.eq.s32.totalorder %s20, 1
      %p101 = scmp.ne.s32.totalorder %s96, %s98
      %p102 = scmp.eq.s32.totalorder %s20, 0
      %p103 = por %p101, %p102
      %p104 = scmp.ne.s32.totalorder %s96, %s98
      %p105 = scmp.eq.s32.totalorder %s25, 1
      %p106 = por %p104, %p105
      %p107 = scmp.ne.s32.totalorder %s98, %s99
      %p108 = scmp.eq.s32.totalorder %s25, 0
      %p109 = por %p107, %p108
      %p110 = scmp.ne.s32.totalorder %s98, %s99
      %p111 = scmp.eq.s32.totalorder %s26, 1
      %p112 = por %p110, %p111
      %p114 = scmp.ne.s32.totalorder %s99, %s113
      %p115 = scmp.eq.s32.totalorder %s26, 0
      %p116 = por %p114, %p115
      %s118 = sadd.s32 %s117, 1
      %p121 = scmp.eq.s32.totalorder %s20, 1
      %p122 = scmp.ne.s32.totalorder %s117, %s119
      %p123 = scmp.eq.s32.totalorder %s20, 0
      %p124 = por %p122, %p123
      %p125 = scmp.ne.s32.totalorder %s117, %s119
      %p126 = scmp.eq.s32.totalorder %s25, 1
      %p127 = por %p125, %p126
      %p128 = scmp.ne.s32.totalorder %s119, %s120
      %p129 = scmp.eq.s32.totalorder %s25, 0
      %p130 = por %p128, %p129
      %p131 = scmp.ne.s32.totalorder %s119, %s120
      %p132 = scmp.eq.s32.totalorder %s26, 1
      %p133 = por %p131, %p132
      %p135 = scmp.ne.s32.totalorder %s120, %s134
      %p136 = scmp.eq.s32.totalorder %s26, 0
      %p137 = por %p135, %p136
      %s139 = sadd.s32 %s138, 1
      %p142 = scmp.eq.s32.totalorder %s20, 1
      %p143 = scmp.ne.s32.totalorder %s138, %s140
      %p144 = scmp.eq.s32.totalorder %s20, 0
      %p145 = por %p143, %p144
      %p146 = scmp.ne.s32.totalorder %s138, %s140
      %p147 = scmp.eq.s32.totalorder %s25, 1
      %p148 = por %p146, %p147
      %p149 = scmp.ne.s32.totalorder %s140, %s141
      %p150 = scmp.eq.s32.totalorder %s25, 0
      %p151 = por %p149, %p150
      %p152 = scmp.ne.s32.totalorder %s140, %s141
      %p153 = scmp.eq.s32.totalorder %s26, 1
      %p154 = por %p152, %p153
      %p156 = scmp.ne.s32.totalorder %s141, %s155
      %p157 = scmp.eq.s32.totalorder %s26, 0
      %p158 = por %p156, %p157
      %s160 = sadd.s32 %s159, 1
      %p163 = scmp.eq.s32.totalorder %s20, 1
      %p164 = scmp.ne.s32.totalorder %s159, %s161
      %p165 = scmp.eq.s32.totalorder %s20, 0
      %p166 = por %p164, %p165
      %p167 = scmp.ne.s32.totalorder %s159, %s161
      %p168 = scmp.eq.s32.totalorder %s25, 1
      %p169 = por %p167, %p168
      %p170 = scmp.ne.s32.totalorder %s161, %s162
      %p171 = scmp.eq.s32.totalorder %s25, 0
      %p172 = por %p170, %p171
      %p173 = scmp.ne.s32.totalorder %s161, %s162
      %p174 = scmp.eq.s32.totalorder %s26, 1
      %p175 = por %p173, %p174
      %p177 = scmp.ne.s32.totalorder %s162, %s176
      %p178 = scmp.eq.s32.totalorder %s26, 0
      %p179 = por %p177, %p178
      %s181 = sadd.s32 %s180, 1
      %p184 = scmp.eq.s32.totalorder %s20, 1
      %p185 = scmp.ne.s32.totalorder %s180, %s182
      %p186 = scmp.eq.s32.totalorder %s20, 0
      %p187 = por %p185, %p186
      %p188 = scmp.ne.s32.totalorder %s180, %s182
      %p189 = scmp.eq.s32.totalorder %s25, 1
      %p190 = por %p188, %p189
      %p191 = scmp.ne.s32.totalorder %s182, %s183
      %p192 = scmp.eq.s32.totalorder %s25, 0
      %p193 = por %p191, %p192
      %p194 = scmp.ne.s32.totalorder %s182, %s183
      %p195 = scmp.eq.s32.totalorder %s26, 1
      %p196 = por %p194, %p195
      %p198 = scmp.ne.s32.totalorder %s183, %s197
      %p199 = scmp.eq.s32.totalorder %s26, 0
      %p200 = por %p198, %p199
      %s202 = sadd.s32 %s201, 1
      %p205 = scmp.eq.s32.totalorder %s20, 1
      %p206 = scmp.ne.s32.totalorder %s201, %s203
      %p207 = scmp.eq.s32.totalorder %s20, 0
      %p208 = por %p206, %p207
      %p209 = scmp.ne.s32.totalorder %s201, %s203
      %p210 = scmp.eq.s32.totalorder %s25, 1
      %p211 = por %p209, %p210
      %p212 = scmp.ne.s32.totalorder %s203, %s204
      %p213 = scmp.eq.s32.totalorder %s25, 0
      %p214 = por %p212, %p213
      %p215 = scmp.ne.s32.totalorder %s203, %s204
      %p216 = scmp.eq.s32.totalorder %s26, 1
      %p217 = por %p215, %p216
      %p219 = scmp.ne.s32.totalorder %s204, %s218
      %p220 = scmp.eq.s32.totalorder %s26, 0
      %p221 = por %p219, %p220
      %s223 = sadd.s32 %s222, 1
      %p226 = scmp.eq.s32.totalorder %s20, 1
      %p227 = scmp.ne.s32.totalorder %s222, %s224
      %p228 = scmp.eq.s32.totalorder %s20, 0
      %p229 = por %p227, %p228
      %p230 = scmp.ne.s32.totalorder %s222, %s224
      %p231 = scmp.eq.s32.totalorder %s25, 1
      %p232 = por %p230, %p231
      %p233 = scmp.ne.s32.totalorder %s224, %s225
      %p234 = scmp.eq.s32.totalorder %s25, 0
      %p235 = por %p233, %p234
      %p236 = scmp.ne.s32.totalorder %s224, %s225
      %p237 = scmp.eq.s32.totalorder %s26, 1
      %p238 = por %p236, %p237
      %p240 = scmp.ne.s32.totalorder %s225, %s239
      %p241 = scmp.eq.s32.totalorder %s26, 0
      %p242 = por %p240, %p241
      %s244 = sadd.s32 %s243, 1
      %p247 = scmp.eq.s32.totalorder %s20, 1
      %p248 = scmp.ne.s32.totalorder %s243, %s245
      %p249 = scmp.eq.s32.totalorder %s20, 0
      %p250 = por %p248, %p249
      %p251 = scmp.ne.s32.totalorder %s243, %s245
      %p252 = scmp.eq.s32.totalorder %s25, 1
      %p253 = por %p251, %p252
      %p254 = scmp.ne.s32.totalorder %s245, %s246
      %p255 = scmp.eq.s32.totalorder %s25, 0
      %p256 = por %p254, %p255
      %p257 = scmp.ne.s32.totalorder %s245, %s246
      %p258 = scmp.eq.s32.totalorder %s26, 1
      %p259 = por %p257, %p258
      %p261 = scmp.ne.s32.totalorder %s246, %s260
      %p262 = scmp.eq.s32.totalorder %s26, 0
      %p263 = por %p261, %p262
      %s264 = ssub.s32 %s20, %s27
      %p265 = scmp.eq.s32.totalorder %s264, 0
      %s267 = sadd.s32 %s266, 1
      %s268 = scalar_select %p265, %s266, %s267
      %p271 = pneg %p265
      %p272 = scmp.eq.s32.totalorder %s20, 1
      %p273 = por %p271, %p272
      %p274 = scmp.ne.s32.totalorder %s266, %s269
      %p275 = scmp.eq.s32.totalorder %s20, 0
      %p276 = por %p274, %p275
      %p277 = scmp.ne.s32.totalorder %s266, %s269
      %p278 = scmp.eq.s32.totalorder %s25, 1
      %p279 = por %p277, %p278
      %p280 = scmp.ne.s32.totalorder %s269, %s270
      %p281 = scmp.eq.s32.totalorder %s25, 0
      %p282 = por %p280, %p281
      %p283 = scmp.ne.s32.totalorder %s269, %s270
      %p284 = scmp.eq.s32.totalorder %s26, 1
      %p285 = por %p283, %p284
      %p287 = scmp.ne.s32.totalorder %s270, %s286
      %p288 = scmp.eq.s32.totalorder %s26, 0
      %p289 = por %p287, %p288
      %p290 = scmp.le.s32.totalorder 1, %s20
      %p291 = scmp.lt.s32.totalorder %s20, 3
      %p292 = pnand %p290, %p291
      %p293 = pneg %p292
      // Predicated region
      $region9: #{tpu_custom_call.1} parent=5 // pred_check
        _
      $region10: #{tpu_custom_call.1} parent=5 // pred_check_branch
        %295 = sbr.rel (%p292) target = $region12
      $region11: #{tpu_custom_call.1} parent=5 // pred_region
        %s296 = ssub.s32 %s20, 1
        // Predicated region
        $region13: #{tpu_custom_call.1} parent=11 // pred_check
          %p297 = pneg %p67
        $region14: #{tpu_custom_call.1} parent=11 // pred_check_branch
          %299 = sbr.rel (%p297) target = $region16
        $region15: #{tpu_custom_call.1} parent=11 // pred_region
          _
        $region16: #{tpu_custom_call.1} parent=11 // pred_fallthru
          _
        // Predicated region
        $region17: #{tpu_custom_call.1} parent=11 // pred_check
          %p300 = pneg %p88
        $region18: #{tpu_custom_call.1} parent=11 // pred_check_branch
          %302 = sbr.rel (%p300) target = $region20
        $region19: #{tpu_custom_call.1} parent=11 // pred_region
          _
        $region20: #{tpu_custom_call.1} parent=11 // pred_fallthru
          _
        // Predicated region
        $region21: #{tpu_custom_call.1} parent=11 // pred_check
          %p303 = pneg %p109
        $region22: #{tpu_custom_call.1} parent=11 // pred_check_branch
          %305 = sbr.rel (%p303) target = $region24
        $region23: #{tpu_custom_call.1} parent=11 // pred_region
          _
        $region24: #{tpu_custom_call.1} parent=11 // pred_fallthru
          _
        // Predicated region
        $region25: #{tpu_custom_call.1} parent=11 // pred_check
          %p306 = pneg %p130
        $region26: #{tpu_custom_call.1} parent=11 // pred_check_branch
          %308 = sbr.rel (%p306) target = $region28
        $region27: #{tpu_custom_call.1} parent=11 // pred_region
          _
        $region28: #{tpu_custom_call.1} parent=11 // pred_fallthru
          _
        // Predicated region
        $region29: #{tpu_custom_call.1} parent=11 // pred_check
          %p309 = pneg %p151
        $region30: #{tpu_custom_call.1} parent=11 // pred_check_branch
          %311 = sbr.rel (%p309) target = $region32
        $region31: #{tpu_custom_call.1} parent=11 // pred_region
          _
        $region32: #{tpu_custom_call.1} parent=11 // pred_fallthru
          _
        // Predicated region
        $region33: #{tpu_custom_call.1} parent=11 // pred_check
          %p312 = pneg %p172
        $region34: #{tpu_custom_call.1} parent=11 // pred_check_branch
          %314 = sbr.rel (%p312) target = $region36
        $region35: #{tpu_custom_call.1} parent=11 // pred_region
          _
        $region36: #{tpu_custom_call.1} parent=11 // pred_fallthru
          _
        // Predicated region
        $region37: #{tpu_custom_call.1} parent=11 // pred_check
          %p315 = pneg %p193
        $region38: #{tpu_custom_call.1} parent=11 // pred_check_branch
          %317 = sbr.rel (%p315) target = $region40
        $region39: #{tpu_custom_call.1} parent=11 // pred_region
          _
        $region40: #{tpu_custom_call.1} parent=11 // pred_fallthru
          _
        // Predicated region
        $region41: #{tpu_custom_call.1} parent=11 // pred_check
          %p318 = pneg %p214
        $region42: #{tpu_custom_call.1} parent=11 // pred_check_branch
          %320 = sbr.rel (%p318) target = $region44
        $region43: #{tpu_custom_call.1} parent=11 // pred_region
          _
        $region44: #{tpu_custom_call.1} parent=11 // pred_fallthru
          _
        // Predicated region
        $region45: #{tpu_custom_call.1} parent=11 // pred_check
          %p321 = pneg %p235
        $region46: #{tpu_custom_call.1} parent=11 // pred_check_branch
          %323 = sbr.rel (%p321) target = $region48
        $region47: #{tpu_custom_call.1} parent=11 // pred_region
          _
        $region48: #{tpu_custom_call.1} parent=11 // pred_fallthru
          _
        // Predicated region
        $region49: #{tpu_custom_call.1} parent=11 // pred_check
          %p324 = pneg %p256
        $region50: #{tpu_custom_call.1} parent=11 // pred_check_branch
          %326 = sbr.rel (%p324) target = $region52
        $region51: #{tpu_custom_call.1} parent=11 // pred_region
          _
        $region52: #{tpu_custom_call.1} parent=11 // pred_fallthru
          _
      $region12: #{tpu_custom_call.1} parent=5 // pred_fallthru
        _
      %p327 = scmp.lt.s32.totalorder %s20, 2
      // Predicated region
      $region53: #{tpu_custom_call.1} parent=5 // pred_check
        %p328 = pneg %p327
      $region54: #{tpu_custom_call.1} parent=5 // pred_check_branch
        %330 = sbr.rel (%p328) target = $region56
      $region55: #{tpu_custom_call.1} parent=5 // pred_region
        // Predicated region
        $region57: #{tpu_custom_call.1} parent=55 // pred_check
          %p331 = pneg %p40
        $region58: #{tpu_custom_call.1} parent=55 // pred_check_branch
          %333 = sbr.rel (%p331) target = $region60
        $region59: #{tpu_custom_call.1} parent=55 // pred_region
          %s334 = sand.u32 %s30, 1
          %s335 = sand.u32 %s30, 1
          %s336 = smul.addr %s335, 16
          %s337 = scalar_lea.vmem [#allocation2], %s336
          %s338 = smul.addr %s20, 8
          %s339 = scalar_lea.vmem %s0, %s338
          // Predicated region
          $region61: #{tpu_custom_call.1} parent=59 // pred_check
            _
          $region62: #{tpu_custom_call.1} parent=59 // pred_check_branch
            %341 = sbr.rel (0) target = $region64
          $region63: #{tpu_custom_call.1} parent=59 // pred_region
            // Predicated region
            $region65: #{tpu_custom_call.1} parent=63 // pred_check
              _
            $region66: #{tpu_custom_call.1} parent=63 // pred_check_branch
              %343 = sbr.rel (0) target = $region68
            $region67: #{tpu_custom_call.1} parent=63 // pred_region
              // Predicated region
              $region80: #{tpu_custom_call.1} parent=67 // pred_check
                _
              $region81: #{tpu_custom_call.1} parent=67 // pred_check_branch
                %360 = sbr.rel (0) target = $region83
              $region82: #{tpu_custom_call.1} parent=67 // pred_region
                loop: start=0, step=1, limit=1
                $region84: #{tpu_custom_call.1} parent=82 // loop_pre_header
                  _
                $region85: #{tpu_custom_call.1} parent=82 // loop_header
                  %s362 = sphi 0, %s366
                  %p363 = scmp.ge.s32.totalorder %s362, 1
                  %s367 = sphi %s339, %s339
                  %s368 = sphi %s337, %s337
                $region86: #{tpu_custom_call.1} parent=82 // loop_header_branch
                  %365 = sbr.rel (%p363) target = $region90
                $region87: #{tpu_custom_call.1} parent=82 // loop_body
                  %v369 = vld [vmem:[%s367] sm:$0xff]
                  %370 = vst [vmem:[%s368] sm:$0xff] %v369
                  %v371 = vld [vmem:[%s367 + $0x10] sm:$0xff]
                  %372 = vst [vmem:[%s368 + $0x8] sm:$0xff] %v371
                $region88: #{tpu_custom_call.1} parent=82 // loop_footer
                  %s366 = sadd.s32 1, %s362
                $region89: #{tpu_custom_call.1} parent=82 // loop_footer_branch
                  %361 = sbr.rel target = $region85
                $region90: #{tpu_custom_call.1} parent=82 // loop_exit
                  _
              $region83: #{tpu_custom_call.1} parent=67 // pred_fallthru
                _
              // Predicated region
              $region91: #{tpu_custom_call.1} parent=67 // pred_check
                _
              $region92: #{tpu_custom_call.1} parent=67 // pred_check_branch
                %374 = sbr.rel target = $region94
              $region93: #{tpu_custom_call.1} parent=67 // pred_region
                _
              $region94: #{tpu_custom_call.1} parent=67 // pred_fallthru
                _
            $region68: #{tpu_custom_call.1} parent=63 // pred_fallthru
              _
            // Predicated region
            $region69: #{tpu_custom_call.1} parent=63 // pred_check
              _
            $region70: #{tpu_custom_call.1} parent=63 // pred_check_branch
              %345 = sbr.rel target = $region72
            $region71: #{tpu_custom_call.1} parent=63 // pred_region
              loop: start=0, step=1, limit=1
              $region73: #{tpu_custom_call.1} parent=71 // loop_pre_header
                _
              $region74: #{tpu_custom_call.1} parent=71 // loop_header
                %s348 = sphi 0, %s352
                %p349 = scmp.ge.s32.totalorder %s348, 1
                %s353 = sphi %s339, %s339
                %s354 = sphi %s337, %s337
              $region75: #{tpu_custom_call.1} parent=71 // loop_header_branch
                %351 = sbr.rel (%p349) target = $region79
              $region76: #{tpu_custom_call.1} parent=71 // loop_body
                %v355 = vld [vmem:[%s353] sm:$0xff]
                %356 = vst [vmem:[%s354] sm:$0xff] %v355
                %v357 = vld [vmem:[%s353 + $0x10] sm:$0xff]
                %358 = vst [vmem:[%s354 + $0x8] sm:$0xff] %v357
              $region77: #{tpu_custom_call.1} parent=71 // loop_footer
                %s352 = sadd.s32 1, %s348
              $region78: #{tpu_custom_call.1} parent=71 // loop_footer_branch
                %347 = sbr.rel target = $region74
              $region79: #{tpu_custom_call.1} parent=71 // loop_exit
                _
            $region72: #{tpu_custom_call.1} parent=63 // pred_fallthru
              _
          $region64: #{tpu_custom_call.1} parent=59 // pred_fallthru
            _
          %375 = vnop
        $region60: #{tpu_custom_call.1} parent=55 // pred_fallthru
          _
      $region56: #{tpu_custom_call.1} parent=5 // pred_fallthru
        _
      %p376 = scmp.le.s32.totalorder 1, %s20
      %p377 = scmp.lt.s32.totalorder %s20, 3
      %p378 = pnand %p376, %p377
      %p379 = pneg %p378
      // Predicated region
      $region95: #{tpu_custom_call.1} parent=5 // pred_check
        _
      $region96: #{tpu_custom_call.1} parent=5 // pred_check_branch
        %381 = sbr.rel (%p378) target = $region98
      $region97: #{tpu_custom_call.1} parent=5 // pred_region
        %s382 = ssub.s32 %s20, 1
        %s383 = sand.u32 %s33, 1
        %s384 = sand.u32 %s33, 1
        %s385 = smul.addr %s384, 16
        %s386 = scalar_lea.vmem [#allocation2], %s385
        // Predicated region
        $region99: #{tpu_custom_call.1} parent=97 // pred_check
          %p387 = pneg %p46
        $region100: #{tpu_custom_call.1} parent=97 // pred_check_branch
          %389 = sbr.rel (%p387) target = $region102
        $region101: #{tpu_custom_call.1} parent=97 // pred_region
          _
        $region102: #{tpu_custom_call.1} parent=97 // pred_fallthru
          _
        %s390 = sand.u32 %s33, 1
        %s391 = sand.u32 %s33, 1
        %s392 = smul.addr %s391, 16
        %s393 = scalar_lea.vmem [#allocation2], %s392
        %p394 = pneg %p46
        %p395 = pneg %p43
        %p396 = pneg %p67
        %p397 = pneg %p64
        %p398 = pneg %p88
        %p399 = pneg %p85
        %p400 = pneg %p109
        %p401 = pneg %p106
        %p402 = pneg %p130
        %p403 = pneg %p127
        %p404 = pneg %p151
        %p405 = pneg %p148
        %p406 = pneg %p172
        %p407 = pneg %p169
        %p408 = pneg %p193
        %p409 = pneg %p190
        %p410 = pneg %p214
        %p411 = pneg %p211
        %p412 = pneg %p235
        %p413 = pneg %p232
        %p414 = pneg %p256
        %p415 = pneg %p253
        %p416 = pneg %p282
        %p417 = pneg %p279
        %s418 = sand.u32 %s269, 1
        %s419 = scalar_lea.sflag [#allocation4], %s418
        %s420 = sand.u32 %s269, 1
        %s421 = smul.addr %s420, 32
        %s422 = scalar_lea.vmem [#allocation3], %s421
        %v423 = vld [vmem:[%s386] sm:$0xff]
        %v424 = vld [vmem:[%s386 + $0x8] sm:$0xff]
        %v425 = vlaneseq
        %v426 = vand.u32 %v425, 127
        %v427 = vand.u32 %v426, 15
        %vm428 = vcmp.eq.s32.totalorder %v427, 0
        %vm429 = vcmp.eq.s32.totalorder %v427, 15
        %v430 = vld [vmem:[%s1] sm:$0xff]
        %v431 = vld [vmem:[%s1 + $0x8] sm:$0xff]
        %v432 = vld [vmem:[%s1 + $0x10] sm:$0x3f]
        %v433 = vld [vmem:[%s2] sm:$0xff]
        %v434 = vld [vmem:[%s2 + $0x8] sm:$0xff]
        %v435 = vld [vmem:[%s2 + $0x10] sm:$0x3f]
        %437 = vset.pattern.permute.xlu0 0
        %438 = vperm.xlu0 %437, %v433
        %v439 = vpop.permute.xlu0 %438
        %442 = vset.pattern.permute.xlu0 0
        %443 = vperm.xlu0 %442, %v434
        %v444 = vpop.permute.xlu0 %443
        %447 = vset.pattern.permute.xlu0 0
        %448 = vperm.xlu0 %447, %v435
        %v449 = vpop.permute.xlu0 %448
        %vm451 = vcmask 130048
        %v453 = vsel %vm451, %v430, 0
        %v456 = vsel %vm451, %v431, 0
        %v459 = vsel %vm451, %v432, 0
        %461 = vmatprep.subr.mxu0 0.0
        %462 = vmatpush1.msra.mxu0 %v423
        %463 = vmatprep.subr.mxu0 0.0
        %464 = vmatpush1.msra.mxu0 %v424
        %465 = vmatprep.subr.mxu0 0.0
        %466 = vmatpush1.msra.mxu0 0.0
        %467 = vmatprep.subr.mxu0 0.0
        %468 = vmatpush1.msra.mxu0 0.0
        %469 = vmatprep.subr.mxu0 0.0
        %470 = vmatpush1.msra.mxu0 0.0
        %471 = vmatprep.subr.mxu0 0.0
        %472 = vmatpush1.msra.mxu0 0.0
        %473 = vmatprep.subr.mxu0 0.0
        %474 = vmatpush1.msra.mxu0 0.0
        %475 = vmatprep.subr.mxu0 0.0
        %476 = vmatpush1.msra.mxu0 0.0
        %477 = vmatprep.subr.mxu0 0.0
        %478 = vmatpush1.msra.mxu0 0.0
        %479 = vmatprep.subr.mxu0 0.0
        %480 = vmatpush1.msra.mxu0 0.0
        %481 = vmatprep.subr.mxu0 0.0
        %482 = vmatpush1.msra.mxu0 0.0
        %483 = vmatprep.subr.mxu0 0.0
        %484 = vmatpush1.msra.mxu0 0.0
        %485 = vmatprep.subr.mxu0 0.0
        %486 = vmatpush1.msra.mxu0 0.0
        %487 = vmatprep.subr.mxu0 0.0
        %488 = vmatpush1.msra.mxu0 0.0
        %489 = vmatprep.subr.mxu0 0.0
        %490 = vmatpush1.msra.mxu0 0.0
        %491 = vmatprep.subr.mxu0 0.0
        %492 = vmatpush1.msra.mxu0 0.0
        %493 = vmatprep.subr.mxu0 0.0
        %494 = vmatpush1.msra.mxu0 0.0
        %495 = vmatprep.subr.mxu0 0.0
        %496 = vmatpush1.msra.mxu0 0.0
        %497 = vmatprep.subr.mxu0 0.0
        %498 = vmatpush1.msra.mxu0 0.0
        %499 = vmatprep.subr.mxu0 0.0
        %500 = vmatpush1.msra.mxu0 0.0
        %501 = vmatprep.subr.mxu0 0.0
        %502 = vmatpush1.msra.mxu0 0.0
        %503 = vmatprep.subr.mxu0 0.0
        %504 = vmatpush1.msra.mxu0 0.0
        %505 = vmatprep.subr.mxu0 0.0
        %506 = vmatpush1.msra.mxu0 0.0
        %507 = vmatprep.subr.mxu0 0.0
        %508 = vmatpush1.msra.mxu0 0.0
        %509 = vmatprep.subr.mxu0 0.0
        %510 = vmatpush1.msra.mxu0 0.0
        %511 = vmatprep.subr.mxu0 0.0
        %512 = vmatpush1.msra.mxu0 0.0
        %513 = vmatprep.subr.mxu0 0.0
        %514 = vmatpush1.msra.mxu0 0.0
        %515 = vmatprep.subr.mxu0 0.0
        %516 = vmatpush1.msra.mxu0 0.0
        %517 = vmatprep.subr.mxu0 0.0
        %518 = vmatpush1.msra.mxu0 0.0
        %519 = vmatprep.subr.mxu0 0.0
        %520 = vmatpush1.msra.mxu0 0.0
        %521 = vmatprep.subr.mxu0 0.0
        %522 = vmatpush1.msra.mxu0 0.0
        %523 = vmatprep.subr.mxu0 0.0
        %524 = vmatpush1.msra.mxu0 0.0
        %525 = vmatprep.mubr.f32.mxu0 0.0
        %526 = vmatmul.mubr.f32.gmra.mrb[0].mxu0 %v453
        %v527 = vpop.f32.mrb[0].mxu0
        %v528 = vadd.f32 %v439, %v527
        %v529 = vpop.f32.mrb[0].mxu0
        %530 = vmatprep.mubr.f32.mxu0 0.0
        %531 = vmatmul.mubr.f32.gmra.mrb[0].mxu0 %v456
        %v532 = vpop.f32.mrb[0].mxu0
        %v533 = vadd.f32 %v444, %v532
        %v534 = vpop.f32.mrb[0].mxu0
        %535 = vmatprep.mubr.f32.mxu0 0.0
        %536 = vmatmul.mubr.f32.gmra.mrb[0].mxu0 %v459
        %v537 = vpop.f32.mrb[0].mxu0
        %v538 = vadd.f32 %v449, %v537
        %v539 = vpop.f32.mrb[0].mxu0
        %540 = vdwg.mxu0
        %v541 = vmax.f32 %v528, 0.0
        %v542 = vmax.f32 %v533, 0.0
        %v543 = vmax.f32 %v538, 0.0
        %544 = vrot.lane.b32.xlu0 %v542, 1
        %v545 = vpop.permute.xlu0 %544
        %v546 = vsel %vm428, 1, 0
        %vm547 = vcmp.eq.s32.totalorder %v546, 1
        %v548 = vsel %vm547, 0.0, %v545
        %549 = vrot.lane.b32.xlu0 %v542, 127
        %v550 = vpop.permute.xlu0 %549
        %v551 = vsel %vm429, 1, 0
        %vm552 = vcmp.eq.s32.totalorder %v551, 1
        %v553 = vsel %vm552, 0.0, %v550
        %v555 = vrot.slane %v542, 2
        %v558 = vrot.slane %v553, 4
        %vm560 = vcmask 1045504
        %v561 = vsel %vm560, %v548, %v555
        %vm562 = vcmask 1043456
        %v563 = vsel %vm562, %v555, %v558
        %v564 = vld [vmem:[%s3] sm:$0xff]
        %v565 = vld [vmem:[%s4] sm:$0xff]
        %567 = vset.pattern.permute.xlu0 0
        %568 = vperm.xlu0 %567, %v565
        %v569 = vpop.permute.xlu0 %568
        %vm571 = vcmask 146432
        %v573 = vsel %vm571, %v564, 0
        %vm575 = vcmask 1041408
        %v576 = vsel %vm575, %v558, 0
        %578 = vmatprep.subr.mxu0 0.0
        %579 = vmatpush1.msra.mxu0 %v561
        %580 = vmatprep.subr.mxu0 0.0
        %581 = vmatpush1.msra.mxu0 %v563
        %582 = vmatprep.subr.mxu0 0.0
        %583 = vmatpush1.msra.mxu0 %v576
        %584 = vmatprep.subr.mxu0 0.0
        %585 = vmatpush1.msra.mxu0 0.0
        %586 = vmatprep.subr.mxu0 0.0
        %587 = vmatpush1.msra.mxu0 0.0
        %588 = vmatprep.subr.mxu0 0.0
        %589 = vmatpush1.msra.mxu0 0.0
        %590 = vmatprep.subr.mxu0 0.0
        %591 = vmatpush1.msra.mxu0 0.0
        %592 = vmatprep.subr.mxu0 0.0
        %593 = vmatpush1.msra.mxu0 0.0
        %594 = vmatprep.subr.mxu0 0.0
        %595 = vmatpush1.msra.mxu0 0.0
        %596 = vmatprep.subr.mxu0 0.0
        %597 = vmatpush1.msra.mxu0 0.0
        %598 = vmatprep.subr.mxu0 0.0
        %599 = vmatpush1.msra.mxu0 0.0
        %600 = vmatprep.subr.mxu0 0.0
        %601 = vmatpush1.msra.mxu0 0.0
        %602 = vmatprep.subr.mxu0 0.0
        %603 = vmatpush1.msra.mxu0 0.0
        %604 = vmatprep.subr.mxu0 0.0
        %605 = vmatpush1.msra.mxu0 0.0
        %606 = vmatprep.subr.mxu0 0.0
        %607 = vmatpush1.msra.mxu0 0.0
        %608 = vmatprep.subr.mxu0 0.0
        %609 = vmatpush1.msra.mxu0 0.0
        %610 = vmatprep.subr.mxu0 0.0
        %611 = vmatpush1.msra.mxu0 0.0
        %612 = vmatprep.subr.mxu0 0.0
        %613 = vmatpush1.msra.mxu0 0.0
        %614 = vmatprep.subr.mxu0 0.0
        %615 = vmatpush1.msra.mxu0 0.0
        %616 = vmatprep.subr.mxu0 0.0
        %617 = vmatpush1.msra.mxu0 0.0
        %618 = vmatprep.subr.mxu0 0.0
        %619 = vmatpush1.msra.mxu0 0.0
        %620 = vmatprep.subr.mxu0 0.0
        %621 = vmatpush1.msra.mxu0 0.0
        %622 = vmatprep.subr.mxu0 0.0
        %623 = vmatpush1.msra.mxu0 0.0
        %624 = vmatprep.subr.mxu0 0.0
        %625 = vmatpush1.msra.mxu0 0.0
        %626 = vmatprep.subr.mxu0 0.0
        %627 = vmatpush1.msra.mxu0 0.0
        %628 = vmatprep.subr.mxu0 0.0
        %629 = vmatpush1.msra.mxu0 0.0
        %630 = vmatprep.subr.mxu0 0.0
        %631 = vmatpush1.msra.mxu0 0.0
        %632 = vmatprep.subr.mxu0 0.0
        %633 = vmatpush1.msra.mxu0 0.0
        %634 = vmatprep.subr.mxu0 0.0
        %635 = vmatpush1.msra.mxu0 0.0
        %636 = vmatprep.subr.mxu0 0.0
        %637 = vmatpush1.msra.mxu0 0.0
        %638 = vmatprep.subr.mxu0 0.0
        %639 = vmatpush1.msra.mxu0 0.0
        %640 = vmatprep.subr.mxu0 0.0
        %641 = vmatpush1.msra.mxu0 0.0
        %642 = vmatprep.mubr.f32.mxu0 0.0
        %643 = vmatmul.mubr.f32.gmra.mrb[0].mxu0 %v573
        %v644 = vpop.f32.mrb[0].mxu0
        %v645 = vadd.f32 %v569, %v644
        %v646 = vpop.f32.mrb[0].mxu0
        %647 = vdwg.mxu0
        %v648 = vmax.f32 %v645, 0.0
        %v650 = vrot.slane %v542, 6
        %v651 = vrot.slane %v543, 6
        %v652 = vsel %vm575, %v650, %v651
        %654 = vrot.lane.b32.xlu0 %v652, 1
        %v655 = vpop.permute.xlu0 %654
        %v656 = vsel %vm547, 0.0, %v655
        %657 = vrot.lane.b32.xlu0 %v652, 127
        %v658 = vpop.permute.xlu0 %657
        %v659 = vsel %vm552, 0.0, %v658
        %v660 = vld [vmem:[%s5] sm:$0xff]
        %v661 = vld [vmem:[%s5 + $0x8] sm:$0xf]
        %v662 = vld [vmem:[%s6] sm:$0xff]
        %v663 = vld [vmem:[%s6 + $0x8] sm:$0xf]
        %665 = vset.pattern.permute.xlu0 0
        %666 = vperm.xlu0 %665, %v662
        %v667 = vpop.permute.xlu0 %666
        %670 = vset.pattern.permute.xlu0 0
        %671 = vperm.xlu0 %670, %v663
        %v672 = vpop.permute.xlu0 %671
        %vm674 = vcmask 195584
        %v676 = vsel %vm674, %v660, 0
        %v679 = vsel %vm674, %v661, 0
        %681 = vmatprep.subr.mxu0 0.0
        %682 = vmatpush1.msra.mxu0 %v656
        %683 = vmatprep.subr.mxu0 0.0
        %684 = vmatpush1.msra.mxu0 %v652
        %685 = vmatprep.subr.mxu0 0.0
        %686 = vmatpush1.msra.mxu0 %v659
        %687 = vmatprep.subr.mxu0 0.0
        %688 = vmatpush1.msra.mxu0 0.0
        %689 = vmatprep.subr.mxu0 0.0
        %690 = vmatpush1.msra.mxu0 0.0
        %691 = vmatprep.subr.mxu0 0.0
        %692 = vmatpush1.msra.mxu0 0.0
        %693 = vmatprep.subr.mxu0 0.0
        %694 = vmatpush1.msra.mxu0 0.0
        %695 = vmatprep.subr.mxu0 0.0
        %696 = vmatpush1.msra.mxu0 0.0
        %697 = vmatprep.subr.mxu0 0.0
        %698 = vmatpush1.msra.mxu0 0.0
        %699 = vmatprep.subr.mxu0 0.0
        %700 = vmatpush1.msra.mxu0 0.0
        %701 = vmatprep.subr.mxu0 0.0
        %702 = vmatpush1.msra.mxu0 0.0
        %703 = vmatprep.subr.mxu0 0.0
        %704 = vmatpush1.msra.mxu0 0.0
        %705 = vmatprep.subr.mxu0 0.0
        %706 = vmatpush1.msra.mxu0 0.0
        %707 = vmatprep.subr.mxu0 0.0
        %708 = vmatpush1.msra.mxu0 0.0
        %709 = vmatprep.subr.mxu0 0.0
        %710 = vmatpush1.msra.mxu0 0.0
        %711 = vmatprep.subr.mxu0 0.0
        %712 = vmatpush1.msra.mxu0 0.0
        %713 = vmatprep.subr.mxu0 0.0
        %714 = vmatpush1.msra.mxu0 0.0
        %715 = vmatprep.subr.mxu0 0.0
        %716 = vmatpush1.msra.mxu0 0.0
        %717 = vmatprep.subr.mxu0 0.0
        %718 = vmatpush1.msra.mxu0 0.0
        %719 = vmatprep.subr.mxu0 0.0
        %720 = vmatpush1.msra.mxu0 0.0
        %721 = vmatprep.subr.mxu0 0.0
        %722 = vmatpush1.msra.mxu0 0.0
        %723 = vmatprep.subr.mxu0 0.0
        %724 = vmatpush1.msra.mxu0 0.0
        %725 = vmatprep.subr.mxu0 0.0
        %726 = vmatpush1.msra.mxu0 0.0
        %727 = vmatprep.subr.mxu0 0.0
        %728 = vmatpush1.msra.mxu0 0.0
        %729 = vmatprep.subr.mxu0 0.0
        %730 = vmatpush1.msra.mxu0 0.0
        %731 = vmatprep.subr.mxu0 0.0
        %732 = vmatpush1.msra.mxu0 0.0
        %733 = vmatprep.subr.mxu0 0.0
        %734 = vmatpush1.msra.mxu0 0.0
        %735 = vmatprep.subr.mxu0 0.0
        %736 = vmatpush1.msra.mxu0 0.0
        %737 = vmatprep.subr.mxu0 0.0
        %738 = vmatpush1.msra.mxu0 0.0
        %739 = vmatprep.subr.mxu0 0.0
        %740 = vmatpush1.msra.mxu0 0.0
        %741 = vmatprep.subr.mxu0 0.0
        %742 = vmatpush1.msra.mxu0 0.0
        %743 = vmatprep.subr.mxu0 0.0
        %744 = vmatpush1.msra.mxu0 0.0
        %745 = vmatprep.mubr.f32.mxu0 0.0
        %746 = vmatmul.mubr.f32.gmra.mrb[0].mxu0 %v676
        %v747 = vpop.f32.mrb[0].mxu0
        %v748 = vadd.f32 %v667, %v747
        %v749 = vpop.f32.mrb[0].mxu0
        %750 = vmatprep.mubr.f32.mxu0 0.0
        %751 = vmatmul.mubr.f32.gmra.mrb[0].mxu0 %v679
        %v752 = vpop.f32.mrb[0].mxu0
        %v753 = vadd.f32 %v672, %v752
        %v754 = vpop.f32.mrb[0].mxu0
        %755 = vdwg.mxu0
        %v756 = vmax.f32 %v748, 0.0
        %v757 = vmax.f32 %v753, 0.0
        %758 = vrot.lane.b32.xlu0 %v756, 1
        %v759 = vpop.permute.xlu0 %758
        %760 = vrot.lane.b32.xlu0 %v757, 1
        %v761 = vpop.permute.xlu0 %760
        %v762 = vsel %vm547, 0.0, %v759
        %v763 = vsel %vm547, 0.0, %v761
        %764 = vrot.lane.b32.xlu0 %v756, 127
        %v765 = vpop.permute.xlu0 %764
        %766 = vrot.lane.b32.xlu0 %v757, 127
        %v767 = vpop.permute.xlu0 %766
        %v768 = vsel %vm552, 0.0, %v765
        %v769 = vsel %vm552, 0.0, %v767
        %v772 = vrot.slane %v756, 4
        %v773 = vrot.slane %v757, 4
        %v774 = vsel %vm562, %v772, %v773
        %v777 = vsel %vm562, %v763, %v772
        %v778 = vld [vmem:[%s7] sm:$0xff]
        %v779 = vld [vmem:[%s7 + $0x8] sm:$0xf]
        %v780 = vld [vmem:[%s8] sm:$0xff]
        %v781 = vld [vmem:[%s8 + $0x8] sm:$0xf]
        %783 = vset.pattern.permute.xlu0 0
        %784 = vperm.xlu0 %783, %v780
        %v785 = vpop.permute.xlu0 %784
        %788 = vset.pattern.permute.xlu0 0
        %789 = vperm.xlu0 %788, %v781
        %v790 = vpop.permute.xlu0 %789
        %vm792 = vcmask 293888
        %v794 = vsel %vm792, %v778, 0
        %v797 = vsel %vm792, %v779, 0
        %v800 = vsel %vm562, %v769, 0
        %802 = vmatprep.subr.mxu0 0.0
        %803 = vmatpush1.msra.mxu0 %v762
        %804 = vmatprep.subr.mxu0 0.0
        %805 = vmatpush1.msra.mxu0 %v777
        %806 = vmatprep.subr.mxu0 0.0
        %807 = vmatpush1.msra.mxu0 %v774
        %808 = vmatprep.subr.mxu0 0.0
        %809 = vmatpush1.msra.mxu0 %v768
        %810 = vmatprep.subr.mxu0 0.0
        %811 = vmatpush1.msra.mxu0 %v800
        %812 = vmatprep.subr.mxu0 0.0
        %813 = vmatpush1.msra.mxu0 0.0
        %814 = vmatprep.subr.mxu0 0.0
        %815 = vmatpush1.msra.mxu0 0.0
        %816 = vmatprep.subr.mxu0 0.0
        %817 = vmatpush1.msra.mxu0 0.0
        %818 = vmatprep.subr.mxu0 0.0
        %819 = vmatpush1.msra.mxu0 0.0
        %820 = vmatprep.subr.mxu0 0.0
        %821 = vmatpush1.msra.mxu0 0.0
        %822 = vmatprep.subr.mxu0 0.0
        %823 = vmatpush1.msra.mxu0 0.0
        %824 = vmatprep.subr.mxu0 0.0
        %825 = vmatpush1.msra.mxu0 0.0
        %826 = vmatprep.subr.mxu0 0.0
        %827 = vmatpush1.msra.mxu0 0.0
        %828 = vmatprep.subr.mxu0 0.0
        %829 = vmatpush1.msra.mxu0 0.0
        %830 = vmatprep.subr.mxu0 0.0
        %831 = vmatpush1.msra.mxu0 0.0
        %832 = vmatprep.subr.mxu0 0.0
        %833 = vmatpush1.msra.mxu0 0.0
        %834 = vmatprep.subr.mxu0 0.0
        %835 = vmatpush1.msra.mxu0 0.0
        %836 = vmatprep.subr.mxu0 0.0
        %837 = vmatpush1.msra.mxu0 0.0
        %838 = vmatprep.subr.mxu0 0.0
        %839 = vmatpush1.msra.mxu0 0.0
        %840 = vmatprep.subr.mxu0 0.0
        %841 = vmatpush1.msra.mxu0 0.0
        %842 = vmatprep.subr.mxu0 0.0
        %843 = vmatpush1.msra.mxu0 0.0
        %844 = vmatprep.subr.mxu0 0.0
        %845 = vmatpush1.msra.mxu0 0.0
        %846 = vmatprep.subr.mxu0 0.0
        %847 = vmatpush1.msra.mxu0 0.0
        %848 = vmatprep.subr.mxu0 0.0
        %849 = vmatpush1.msra.mxu0 0.0
        %850 = vmatprep.subr.mxu0 0.0
        %851 = vmatpush1.msra.mxu0 0.0
        %852 = vmatprep.subr.mxu0 0.0
        %853 = vmatpush1.msra.mxu0 0.0
        %854 = vmatprep.subr.mxu0 0.0
        %855 = vmatpush1.msra.mxu0 0.0
        %856 = vmatprep.subr.mxu0 0.0
        %857 = vmatpush1.msra.mxu0 0.0
        %858 = vmatprep.subr.mxu0 0.0
        %859 = vmatpush1.msra.mxu0 0.0
        %860 = vmatprep.subr.mxu0 0.0
        %861 = vmatpush1.msra.mxu0 0.0
        %862 = vmatprep.subr.mxu0 0.0
        %863 = vmatpush1.msra.mxu0 0.0
        %864 = vmatprep.subr.mxu0 0.0
        %865 = vmatpush1.msra.mxu0 0.0
        %866 = vmatprep.mubr.f32.mxu0 0.0
        %867 = vmatmul.mubr.f32.gmra.mrb[0].mxu0 %v794
        %v868 = vpop.f32.mrb[0].mxu0
        %v869 = vadd.f32 %v785, %v868
        %v870 = vpop.f32.mrb[0].mxu0
        %871 = vmatprep.mubr.f32.mxu0 0.0
        %872 = vmatmul.mubr.f32.gmra.mrb[0].mxu0 %v797
        %v873 = vpop.f32.mrb[0].mxu0
        %v874 = vadd.f32 %v790, %v873
        %v875 = vpop.f32.mrb[0].mxu0
        %876 = vdwg.mxu0
        %v877 = vmax.f32 %v869, 0.0
        %v878 = vmax.f32 %v874, 0.0
        %879 = vrot.lane.b32.xlu0 %v423, 1
        %v880 = vpop.permute.xlu0 %879
        %881 = vrot.lane.b32.xlu0 %v424, 1
        %v882 = vpop.permute.xlu0 %881
        %v883 = vsel %vm547, %v423, %v880
        %v884 = vsel %vm547, %v424, %v882
        %885 = vrot.lane.b32.xlu0 %v423, 127
        %v886 = vpop.permute.xlu0 %885
        %887 = vrot.lane.b32.xlu0 %v424, 127
        %v888 = vpop.permute.xlu0 %887
        %v889 = vsel %vm552, %v423, %v886
        %v890 = vsel %vm552, %v424, %v888
        %v891 = vmax.f32 %v883, %v423
        %v892 = vmax.f32 %v884, %v424
        %v893 = vmax.f32 %v891, %v889
        %v894 = vmax.f32 %v892, %v890
        %v895 = vld [vmem:[%s9] sm:$0xf]
        %v896 = vld [vmem:[%s10] sm:$0xf]
        %898 = vset.pattern.permute.xlu0 0
        %899 = vperm.xlu0 %898, %v896
        %v900 = vpop.permute.xlu0 %899
        %v903 = vsel %vm451, %v895, 0
        %905 = vmatprep.subr.mxu0 0.0
        %906 = vmatpush1.msra.mxu0 %v893
        %907 = vmatprep.subr.mxu0 0.0
        %908 = vmatpush1.msra.mxu0 %v894
        %909 = vmatprep.subr.mxu0 0.0
        %910 = vmatpush1.msra.mxu0 0.0
        %911 = vmatprep.subr.mxu0 0.0
        %912 = vmatpush1.msra.mxu0 0.0
        %913 = vmatprep.subr.mxu0 0.0
        %914 = vmatpush1.msra.mxu0 0.0
        %915 = vmatprep.subr.mxu0 0.0
        %916 = vmatpush1.msra.mxu0 0.0
        %917 = vmatprep.subr.mxu0 0.0
        %918 = vmatpush1.msra.mxu0 0.0
        %919 = vmatprep.subr.mxu0 0.0
        %920 = vmatpush1.msra.mxu0 0.0
        %921 = vmatprep.subr.mxu0 0.0
        %922 = vmatpush1.msra.mxu0 0.0
        %923 = vmatprep.subr.mxu0 0.0
        %924 = vmatpush1.msra.mxu0 0.0
        %925 = vmatprep.subr.mxu0 0.0
        %926 = vmatpush1.msra.mxu0 0.0
        %927 = vmatprep.subr.mxu0 0.0
        %928 = vmatpush1.msra.mxu0 0.0
        %929 = vmatprep.subr.mxu0 0.0
        %930 = vmatpush1.msra.mxu0 0.0
        %931 = vmatprep.subr.mxu0 0.0
        %932 = vmatpush1.msra.mxu0 0.0
        %933 = vmatprep.subr.mxu0 0.0
        %934 = vmatpush1.msra.mxu0 0.0
        %935 = vmatprep.subr.mxu0 0.0
        %936 = vmatpush1.msra.mxu0 0.0
        %937 = vmatprep.subr.mxu0 0.0
        %938 = vmatpush1.msra.mxu0 0.0
        %939 = vmatprep.subr.mxu0 0.0
        %940 = vmatpush1.msra.mxu0 0.0
        %941 = vmatprep.subr.mxu0 0.0
        %942 = vmatpush1.msra.mxu0 0.0
        %943 = vmatprep.subr.mxu0 0.0
        %944 = vmatpush1.msra.mxu0 0.0
        %945 = vmatprep.subr.mxu0 0.0
        %946 = vmatpush1.msra.mxu0 0.0
        %947 = vmatprep.subr.mxu0 0.0
        %948 = vmatpush1.msra.mxu0 0.0
        %949 = vmatprep.subr.mxu0 0.0
        %950 = vmatpush1.msra.mxu0 0.0
        %951 = vmatprep.subr.mxu0 0.0
        %952 = vmatpush1.msra.mxu0 0.0
        %953 = vmatprep.subr.mxu0 0.0
        %954 = vmatpush1.msra.mxu0 0.0
        %955 = vmatprep.subr.mxu0 0.0
        %956 = vmatpush1.msra.mxu0 0.0
        %957 = vmatprep.subr.mxu0 0.0
        %958 = vmatpush1.msra.mxu0 0.0
        %959 = vmatprep.subr.mxu0 0.0
        %960 = vmatpush1.msra.mxu0 0.0
        %961 = vmatprep.subr.mxu0 0.0
        %962 = vmatpush1.msra.mxu0 0.0
        %963 = vmatprep.subr.mxu0 0.0
        %964 = vmatpush1.msra.mxu0 0.0
        %965 = vmatprep.subr.mxu0 0.0
        %966 = vmatpush1.msra.mxu0 0.0
        %967 = vmatprep.subr.mxu0 0.0
        %968 = vmatpush1.msra.mxu0 0.0
        %969 = vmatprep.mubr.f32.mxu0 0.0
        %970 = vmatmul.mubr.f32.gmra.mrb[0].mxu0 %v903
        %v971 = vpop.f32.mrb[0].mxu0
        %v972 = vadd.f32 %v900, %v971
        %v973 = vpop.f32.mrb[0].mxu0
        %974 = vdwg.mxu0
        %v975 = vmax.f32 %v972, 0.0
        %v977 = vrot.slane %v975, 4
        %v979 = vsel %vm562, %v878, %v977
        %980 = vst [vmem:[%s422] sm:$0xff] %v541
        %981 = vst [vmem:[%s422 + $0x8] sm:$0xff] %v648
        %982 = vst [vmem:[%s422 + $0x10] sm:$0xff] %v877
        %983 = vst [vmem:[%s422 + $0x18] sm:$0xff] %v979
        %s984 = sand.u32 %s269, 1
        %s985 = scalar_lea.sflag [#allocation4], %s984
        %s986 = sand.u32 %s269, 1
        %s987 = smul.addr %s986, 32
        %s988 = scalar_lea.vmem [#allocation3], %s987
        // Predicated region
        $region103: #{tpu_custom_call.1} parent=97 // pred_check
          %p989 = pneg %p279
        $region104: #{tpu_custom_call.1} parent=97 // pred_check_branch
          %991 = sbr.rel (%p989) target = $region106
        $region105: #{tpu_custom_call.1} parent=97 // pred_region
          %s993 = ssub.s32 512, 512
          %994 = vsyncadd %s985, %s993
          %s995 = smul.addr %s25, 128
          %s996 = scalar_lea.hbm %s11, %s995
          %s997 = sshll.u32 %s988, 4
          %s998 = int_to_ptr.vmem [resolvable:$true] %s997
          %1003 = dma.vmem_to_hbm [thread:$0]  %s998, 512, %s996, %s985, 128, 256, 8
        $region106: #{tpu_custom_call.1} parent=97 // pred_fallthru
          _
      $region98: #{tpu_custom_call.1} parent=5 // pred_fallthru
        _
      %p1004 = scmp.le.s32.totalorder 2, %s20
      // Predicated region
      $region107: #{tpu_custom_call.1} parent=5 // pred_check
        %p1005 = pneg %p1004
      $region108: #{tpu_custom_call.1} parent=5 // pred_check_branch
        %1007 = sbr.rel (%p1005) target = $region110
      $region109: #{tpu_custom_call.1} parent=5 // pred_region
        %s1008 = ssub.s32 %s20, 2
        // Predicated region
        $region111: #{tpu_custom_call.1} parent=109 // pred_check
          %p1009 = pneg %p285
        $region112: #{tpu_custom_call.1} parent=109 // pred_check_branch
          %1011 = sbr.rel (%p1009) target = $region114
        $region113: #{tpu_custom_call.1} parent=109 // pred_region
          %s1012 = sand.u32 %s270, 1
          %s1013 = scalar_lea.sflag [#allocation4], %s1012
          %s1014 = sand.u32 %s270, 1
          %s1015 = smul.addr %s1014, 32
          %s1016 = scalar_lea.vmem [#allocation3], %s1015
          %1017 = dma.done %s1013, 512
        $region114: #{tpu_custom_call.1} parent=109 // pred_fallthru
          _
      $region110: #{tpu_custom_call.1} parent=5 // pred_fallthru
        _
    $region6: #{tpu_custom_call.1} parent=1 // loop_footer
      %s24 = sadd.s32 1, %s20
    $region7: #{tpu_custom_call.1} parent=1 // loop_footer_branch
      %19 = sbr.rel target = $region3
    $region8: #{tpu_custom_call.1} parent=1 // loop_exit
      _
    %1018 = vsyncpa [#allocation4], 1
    %s1019 = scalar_lea.sflag [#allocation4], 1
    %1020 = vsyncpa %s1019, 1

</llo_original>
